<compile_context>
chip_gen: v5e
topology: v5e:2x2
jax: 0.10.0
libtpu: 0.0.40
codegen_flags: <defaults>
</compile_context>

<pallas_src>
import functools
import math
from collections import OrderedDict

import numpy as np
import jax
import jax.numpy as jnp
from jax.experimental import pallas as pl
from jax.experimental.pallas import tpu as pltpu


# ----------------------------------------------------------------------------
# Generic fused linear (+activation) kernel: y = act(x @ w + b)
# ----------------------------------------------------------------------------
def _linear_act_kernel(act, split, x_ref, w_ref, b_ref, o_ref):
    # Cast activations in-kernel (avoids a separate wrapper-side HBM cast pass);
    # weights are already bf16, accumulation stays f32.
    x = x_ref[...].astype(jnp.bfloat16)
    y = jnp.dot(x, w_ref[...], preferred_element_type=jnp.float32) + b_ref[...]
    if act == "relu":
        y = jnp.maximum(y, 0.0)
    elif act == "tanh":
        y = jnp.tanh(y)
    elif act == "tanh_relu_split":
        # tanh on the first `split` output channels, relu on the rest (context head)
        lane = jax.lax.broadcasted_iota(jnp.int32, y.shape, 1)
        y = jnp.where(lane < split, jnp.tanh(y), jnp.maximum(y, 0.0))
    o_ref[...] = y


def pallas_linear(x, w, b, act="none", split=0, row_tile=512):
    """y = act(x @ w + b).

    Whole-array row block only for small M; otherwise fixed 512-row tiles with a
    cdiv grid (Pallas pads/masks the last tile), which stays well inside the 32 MiB
    scoped VMEM default on every generation and keeps the pipeline running.
    """
    M, K = x.shape
    Kw, N = w.shape
    assert K == Kw
    if M <= row_tile:
        tm, gm = M, 1
    else:
        tm, gm = row_tile, pl.cdiv(M, row_tile)
    w = w.astype(jnp.bfloat16)              # no-op when weights were pre-cast in __init__
    b = b.reshape(1, N).astype(jnp.float32)
    return pl.pallas_call(
        functools.partial(_linear_act_kernel, act, split),
        out_shape=jax.ShapeDtypeStruct((M, N), jnp.float32),
        grid=(gm,),
        in_specs=[
            pl.BlockSpec((tm, K), lambda i: (i, 0)),
            pl.BlockSpec((K, N), lambda i: (0, 0)),
            pl.BlockSpec((1, N), lambda i: (0, 0)),
        ],
        out_specs=pl.BlockSpec((tm, N), lambda i: (i, 0)),
        compiler_params=pltpu.CompilerParams(dimension_semantics=("parallel",)),
    )(x, w, b)


# ----------------------------------------------------------------------------
# All-pairs correlation volume — CAPTURE-ONLY path (hot path recomputes corr tiles
# inside the fused update kernel and never materializes this volume in HBM).
# ----------------------------------------------------------------------------
def _corr_kernel(scale, f1_ref, f2_ref, o_ref):
    corr = jax.lax.dot_general(
        f1_ref[...], f2_ref[...],
        dimension_numbers=(((1,), (1,)), ((), ())),
        preferred_element_type=jnp.float32)
    o_ref[...] = corr * scale


def pallas_correlation(f1, f2, row_tile=256):
    """(B, HW, C), (B, HW, C) -> (B, HW, HW) / sqrt(C).

    Runs only when a `corr_block` forward hook is requested, so operands and output
    stay f32 for parity with the PyTorch reference.
    """
    B, M, C = f1.shape
    _, N, _ = f2.shape
    scale = 1.0 / math.sqrt(C)
    tm = M
    if M > row_tile:
        for cand in range(row_tile, 7, -8):
            if M % cand == 0:
                tm = cand
                break
    return pl.pallas_call(
        functools.partial(_corr_kernel, scale),
        out_shape=jax.ShapeDtypeStruct((B, M, N), jnp.float32),
        grid=(B, M // tm),
        in_specs=[
            pl.BlockSpec((pl.Squeezed(), tm, C), lambda b, i: (b, i, 0)),
            pl.BlockSpec((pl.Squeezed(), N, C), lambda b, i: (b, 0, 0)),
        ],
        out_specs=pl.BlockSpec((pl.Squeezed(), tm, N), lambda b, i: (b, i, 0)),
        compiler_params=pltpu.CompilerParams(
            dimension_semantics=("parallel", "parallel"),
            vmem_limit_bytes=32 << 20),
    )(f1.astype(jnp.float32), f2.astype(jnp.float32))


# ----------------------------------------------------------------------------
# Fused iterative update block: on-the-fly correlation + motion encoder + ConvGRU +
# flow head, all ITERS iterations in one VMEM-resident kernel.
# ----------------------------------------------------------------------------
def _fused_update_kernel(iters, hdim,
                         f1_ref, f2_ref, ctx_ref,
                         wmc_ref, wmf_ref, bm_ref,
                         whzr_ref, wqh_ref, wx3m_ref, wx3i_ref, b3_ref,
                         wfh_ref, bfh_ref,
                         out_ref):
    f32, bf16 = jnp.float32, jnp.bfloat16

    # On-the-fly correlation row tile: (tm, C) x (hw, C)^T with bf16 operands.
    # The 1/sqrt(C) scale is folded into wmc on the host, so no extra VPU pass here.
    corr = jax.lax.dot_general(
        f1_ref[...], f2_ref[...],
        dimension_numbers=(((1,), (1,)), ((), ())),
        preferred_element_type=f32).astype(bf16)              # (tm, hw)

    ctx = ctx_ref[...]                                         # (tm, H + C) f32
    h = ctx[:, :hdim]                                          # hidden state (f32 gate math)
    inp = ctx[:, hdim:].astype(bf16)                           # context input

    # Iteration-invariant contributions (corr and context never change).
    mot_const = jnp.dot(corr, wmc_ref[...], preferred_element_type=f32) + bm_ref[...]
    gx_const = jnp.dot(inp, wx3i_ref[...], preferred_element_type=f32) + b3_ref[...]

    flow = jnp.zeros((corr.shape[0], 2), f32)
    # TODO(synk): for real RAFT iteration counts (12-32), switch this static unroll to
    # lax.fori_loop carrying (h, flow) to bound vreg live ranges.
    for _ in range(iters):
        motion = jnp.maximum(
            mot_const + jnp.dot(flow.astype(bf16), wmf_ref[...],
                                preferred_element_type=f32), 0.0)
        gx = gx_const + jnp.dot(motion.astype(bf16), wx3m_ref[...],
                                preferred_element_type=f32)     # (tm, 3H)
        gh = jnp.dot(h.astype(bf16), whzr_ref[...],
                     preferred_element_type=f32)                # (tm, 2H)
        z = jax.nn.sigmoid(gh[:, :hdim] + gx[:, :hdim])
        r = jax.nn.sigmoid(gh[:, hdim:] + gx[:, hdim:2 * hdim])
        q = jnp.tanh(jnp.dot((r * h).astype(bf16), wqh_ref[...],
                             preferred_element_type=f32) + gx[:, 2 * hdim:])
        h = (1.0 - z) * h + z * q
        flow = flow + jnp.dot(h.astype(bf16), wfh_ref[...],
                              preferred_element_type=f32) + bfh_ref[...]

    # Packed writeback: one (tm, H+2) store instead of separate (tm, H) / (tm, 2)
    # stores — single output DMA stream, fewer masked-store epilogues (v5e-friendly).
    out_ref[...] = jnp.concatenate([h, flow], axis=-1)


def _pick_row_tile(hw, c, hdim, cdim, budget_bytes=8 << 20):
    """Largest row tile whose fused-update working set fits a VMEM budget sized for
    v7x (64 MiB physical / 32 MiB scoped default); v5e/v6e have 2x headroom."""
    # per-row bytes: double-buffered f1/ctx/out blocks + in-kernel corr tile (bf16)
    # plus its f32 accumulator.
    per_row = 2 * (c * 2 + (hdim + cdim) * 4 + (hdim + 2) * 4) + hw * 6
    fixed = 2 * hw * c * 2                     # resident (double-buffered) f2 block
    cap = max(8, (budget_bytes - fixed) // max(per_row, 1))
    if hw <= cap or hw % 8 != 0:
        return hw
    tile = 8
    for cand in range(8, hw + 1, 8):
        if hw % cand == 0 and cand <= cap:
            tile = cand
    return tile


def pallas_fused_update(f1, f2, ctx, p, iters, hdim, row_tile):
    """f1/f2: (B, hw, C) features; ctx: (B, hw, H+C) context. Returns (flow, hidden)."""
    B, hw, C = f1.shape
    xc = ctx.shape[-1]
    assert hw % row_tile == 0
    weights = (p["fused.wmc"], p["fused.wmf"], p["fused.bm"],
               p["fused.whzr"], p["fused.wqh"], p["fused.wx3m"], p["fused.wx3i"],
               p["fused.b3"], p["fused.wfh"], p["fused.bfh"])

    def row_spec(n):
        return pl.BlockSpec((pl.Squeezed(), row_tile, n), lambda b, i: (b, i, 0))

    def full_spec(shp):
        return pl.BlockSpec(shp, lambda b, i: (0,) * len(shp))

    out = pl.pallas_call(
        functools.partial(_fused_update_kernel, iters, hdim),
        out_shape=jax.ShapeDtypeStruct((B, hw, hdim + 2), jnp.float32),
        grid=(B, hw // row_tile),
        in_specs=[row_spec(C),
                  pl.BlockSpec((pl.Squeezed(), hw, C), lambda b, i: (b, 0, 0)),
                  row_spec(xc)] + [full_spec(w.shape) for w in weights],
        out_specs=pl.BlockSpec((pl.Squeezed(), row_tile, hdim + 2),
                               lambda b, i: (b, i, 0)),
        compiler_params=pltpu.CompilerParams(
            dimension_semantics=("parallel", "parallel"),
            vmem_limit_bytes=32 << 20),
    )(f1.astype(jnp.bfloat16), f2.astype(jnp.bfloat16), ctx.astype(jnp.float32),
      *weights)
    hidden = out[..., :hdim]
    flow = out[..., hdim:]
    return flow, hidden


# ---- flow_to_image (torchvision.utils.flow_to_image semantics) --------------
_NUM_COLS = 55
_CW_PAD = 64    # colorwheel K padded 55 -> 64 (avoid sublane masking on the reduction dim)


def _make_colorwheel():
    RY, YG, GC, CB, BM, MR = 15, 6, 4, 11, 13, 6
    ncols = RY + YG + GC + CB + BM + MR
    cw = np.zeros((ncols, 3), np.float32)
    col = 0
    cw[0:RY, 0] = 255
    cw[0:RY, 1] = np.floor(255 * np.arange(0, RY) / RY)
    col += RY
    cw[col:col + YG, 0] = 255 - np.floor(255 * np.arange(0, YG) / YG)
    cw[col:col + YG, 1] = 255
    col += YG
    cw[col:col + GC, 1] = 255
    cw[col:col + GC, 2] = np.floor(255 * np.arange(GC) / GC)
    col += GC
    cw[col:col + CB, 1] = 255 - np.floor(255 * np.arange(CB) / CB)
    cw[col:col + CB, 2] = 255
    col += CB
    cw[col:col + BM, 2] = 255
    cw[col:col + BM, 0] = np.floor(255 * np.arange(BM) / BM)
    col += BM
    cw[col:col + MR, 2] = 255 - np.floor(255 * np.arange(MR) / MR)
    cw[col:col + MR, 0] = 255
    return cw


def _flow2img_kernel(num_cols, f_ref, cwT_ref, s_ref, o_ref):
    # f_ref: (3, tile) = [u; v; angle/pi], lane-dense along the pixel axis.
    scale = s_ref[0]                                   # 1/(max_norm + eps), incl. xDOWN
    fv = f_ref[...]
    u = fv[0:1, :]
    v = fv[1:2, :]
    ang = fv[2:3, :]
    rad = jnp.sqrt(u * u + v * v) * scale              # normalized magnitude
    fk = (ang + 1.0) * 0.5 * (num_cols - 1)
    k0f = jnp.floor(fk)
    f = fk - k0f
    k0 = k0f.astype(jnp.int32)
    k1 = jnp.where(k0 + 1 >= num_cols, 0, k0 + 1)
    col_idx = jax.lax.broadcasted_iota(jnp.int32, (cwT_ref.shape[1], fv.shape[1]), 0)
    # Weighted one-hot built in bf16 (half the vreg footprint of the old f32 build),
    # single (3,64)@(64,tile) bf16 matmul with f32 accumulation.
    zero = jnp.zeros((), jnp.bfloat16)
    wsel = (jnp.where(col_idx == k0, (1.0 - f).astype(jnp.bfloat16), zero)
            + jnp.where(col_idx == k1, f.astype(jnp.bfloat16), zero))
    col = jnp.dot(cwT_ref[...], wsel, preferred_element_type=jnp.float32) * (1.0 / 255.0)
    col = 1.0 - rad * (1.0 - col)
    o_ref[...] = jnp.floor(255.0 * col)


def pallas_flow_to_image(flow_lr, down):
    """(B, h, w, 2) f32 low-res flow -> (B, 3, h*down, w*down) uint8 visualization.

    Colorization is pointwise and the global max-norm of the nearest-upsampled,
    xdown-scaled flow equals down*max|flow_lr|, so the kernel runs at LOW resolution
    and the only full-resolution HBM pass is the final uint8 nearest upsample.
    """
    B, h, w, _ = flow_lr.shape
    P = B * h * w
    u = flow_lr[..., 0].reshape(P)
    v = flow_lr[..., 1].reshape(P)
    # TODO(synk): atan2 has no guaranteed Mosaic lowering; computed in JAX glue on the
    # tiny low-res flow.  It is invariant to the (positive) xdown rescale.
    ang = jnp.arctan2(-v, -u) / math.pi
    fin = jnp.stack([u, v, ang], axis=0).astype(jnp.float32)           # (3, P)

    # Global max-norm reduce in JAX (tiny); 1/(max+eps) handed to the kernel in SMEM.
    max_norm = jnp.max(jnp.sqrt(u * u + v * v)) * float(down)
    eps = float(jnp.finfo(jnp.float32).eps)
    rad_scale = jnp.reshape(float(down) / (max_norm + eps), (1,)).astype(jnp.float32)

    cw = np.zeros((_CW_PAD, 3), np.float32)
    cw[:_NUM_COLS] = _make_colorwheel()
    cw_t = jnp.asarray(cw.T, dtype=jnp.bfloat16)                       # (3, 64)

    tile = P if P <= 1024 else 1024
    grid = (pl.cdiv(P, tile),)
    img = pl.pallas_call(
        functools.partial(_flow2img_kernel, _NUM_COLS),
        out_shape=jax.ShapeDtypeStruct((3, P), jnp.float32),
        grid=grid,
        in_specs=[pl.BlockSpec((3, tile), lambda i: (0, i)),
                  pl.BlockSpec((3, _CW_PAD), lambda i: (0, 0)),
                  pl.BlockSpec(memory_space=pltpu.MemorySpace.SMEM)],
        out_specs=pl.BlockSpec((3, tile), lambda i: (0, i)),
        compiler_params=pltpu.CompilerParams(dimension_semantics=("parallel",)),
    )(fin, cw_t, rad_scale)

    img8 = jnp.clip(img, 0.0, 255.0).astype(jnp.uint8)                 # low-res uint8
    img8 = jnp.transpose(img8.reshape(3, B, h, w), (1, 0, 2, 3))       # (B, 3, h, w)
    return jnp.repeat(jnp.repeat(img8, down, axis=2), down, axis=3)    # (B, 3, H, W)


# ----------------------------------------------------------------------------
# conv glue: im2col (plain JAX data movement) + Pallas matmul hot path
# ----------------------------------------------------------------------------
def _im2col(x_nhwc, k, stride, pad):
    # TODO(synk): at production resolutions replace with lax.conv_general_dilated
    # (MXU-native conv HLO) or an in-kernel strided pl.ds row gather to avoid the
    # k^2*C-wide HBM patch materialization; negligible at the toy sizes used here and
    # the matmul hot path stays in Pallas.
    x = jnp.pad(x_nhwc, ((0, 0), (pad, pad), (pad, pad), (0, 0)))
    B, Hp, Wp, C = x.shape
    oh = (Hp - k) // stride + 1
    ow = (Wp - k) // stride + 1
    cols = []
    for i in range(k):
        for j in range(k):
            cols.append(x[:, i:i + stride * oh:stride, j:j + stride * ow:stride, :])
    return jnp.concatenate(cols, axis=-1), oh, ow


def conv2d(x_nhwc, w, b, *, k, stride, pad, act="none"):
    patches, oh, ow = _im2col(x_nhwc, k, stride, pad)
    B = x_nhwc.shape[0]
    flat = patches.reshape(B * oh * ow, k * k * x_nhwc.shape[-1])
    y = pallas_linear(flat, w, b, act=act)
    return y.reshape(B, oh, ow, w.shape[1])


# ----------------------------------------------------------------------------
# The Raft module (simplified raft_large + flow_to_image + hook emulation)
# ----------------------------------------------------------------------------
class Raft:
    """JAX/Pallas re-implementation of the RAFT extractor wrapper.

    forward(img1_batch, img2_batch) -> (flow_to_image(final_flow), selected_out)
    Weights are synthetic & deterministic (no checkpoint load).
    """
    ITERS = 3
    HIDDEN = 16
    CONTEXT = 16
    FEAT = 32
    DOWN = 4           # two stride-2 convs
    INPUT_HW = 16      # toy spatial size expected by the motion encoder

    def __init__(self, output_layers, flatten=False, *args):
        self.output_layers = list(output_layers)
        self.flatten = flatten
        self.selected_out = OrderedDict()

        key = jax.random.PRNGKey(0)

        def nk():
            nonlocal key
            key, sub = jax.random.split(key)
            return sub

        def w_(fi, fo):
            return jax.random.normal(nk(), (fi, fo), jnp.float32) / math.sqrt(fi)

        def b_(fo):
            return 0.01 * jax.random.normal(nk(), (fo,), jnp.float32)

        hw = (self.INPUT_HW // self.DOWN) ** 2   # pixels of one feature map == corr row length
        H, C, F = self.HIDDEN, self.CONTEXT, self.FEAT
        p = {}
        # feature encoder (shared between frames)
        p["fnet.conv1.w"], p["fnet.conv1.b"] = w_(3 * 3 * 3, 16), b_(16)
        p["fnet.conv2.w"], p["fnet.conv2.b"] = w_(3 * 3 * 16, F), b_(F)
        p["fnet.conv3.w"], p["fnet.conv3.b"] = w_(F, F), b_(F)
        # context encoder
        p["cnet.conv1.w"], p["cnet.conv1.b"] = w_(3 * 3 * 3, 16), b_(16)
        p["cnet.conv2.w"], p["cnet.conv2.b"] = w_(3 * 3 * 16, F), b_(F)
        p["cnet.net.w"], p["cnet.net.b"] = w_(F, H), b_(H)
        p["cnet.inp.w"], p["cnet.inp.b"] = w_(F, C), b_(C)
        # update block: motion encoder + ConvGRU (1x1) + flow head
        p["motion.w"], p["motion.b"] = w_(hw + 2, H), b_(H)
        xin = H + C
        for g in ("z", "r", "q"):
            p[f"gru.w{g}h"] = w_(H, H)
            p[f"gru.w{g}x"] = w_(xin, H)
            p[f"gru.b{g}"] = b_(H)
        p["flow_head.w"], p["flow_head.b"] = w_(H, 2), b_(2)

        # --- re-packed (mathematically identical) weight views for the fused kernels ---
        bf16 = jnp.bfloat16
        corr_scale = 1.0 / math.sqrt(F)
        # motion encoder: concat([corr, flow]) @ W == corr @ W[:hw] + flow @ W[hw:];
        # the 1/sqrt(C) corr normalization is folded into the corr-side weight.
        p["fused.wmc"] = (p["motion.w"][:hw] * corr_scale).astype(bf16)
        p["fused.wmf"] = p["motion.w"][hw:].astype(bf16)
        p["fused.bm"] = p["motion.b"].reshape(1, -1)
        # GRU: stack z/r hidden weights, split+stack x weights into motion/inp parts
        p["fused.whzr"] = jnp.concatenate([p["gru.wzh"], p["gru.wrh"]], axis=1).astype(bf16)
        p["fused.wqh"] = p["gru.wqh"].astype(bf16)
        p["fused.wx3m"] = jnp.concatenate(
            [p["gru.wzx"][:H], p["gru.wrx"][:H], p["gru.wqx"][:H]], axis=1).astype(bf16)
        p["fused.wx3i"] = jnp.concatenate(
            [p["gru.wzx"][H:], p["gru.wrx"][H:], p["gru.wqx"][H:]], axis=1).astype(bf16)
        p["fused.b3"] = jnp.concatenate([p["gru.bz"], p["gru.br"], p["gru.bq"]]).reshape(1, -1)
        p["fused.wfh"] = p["flow_head.w"].astype(bf16)
        p["fused.bfh"] = p["flow_head.b"].reshape(1, -1)
        # context heads fused: tanh on first H outputs, relu on last C outputs
        p["cnet.ctx.w"] = jnp.concatenate([p["cnet.net.w"], p["cnet.inp.w"]], axis=1)
        p["cnet.ctx.b"] = jnp.concatenate([p["cnet.net.b"], p["cnet.inp.b"]])
        # pre-cast the reused matmul weights for pallas_linear (biases stay f32)
        for k in ("fnet.conv1.w", "fnet.conv2.w", "fnet.conv3.w",
                  "cnet.conv1.w", "cnet.conv2.w", "cnet.ctx.w"):
            p[k] = p[k].astype(bf16)
        self.params = p

    # ---- sub-networks -------------------------------------------------------
    def _feature_encoder(self, x_nhwc):
        p = self.params
        y = conv2d(x_nhwc, p["fnet.conv1.w"], p["fnet.conv1.b"], k=3, stride=2, pad=1, act="relu")
        y = conv2d(y, p["fnet.conv2.w"], p["fnet.conv2.b"], k=3, stride=2, pad=1, act="relu")
        B, h, w, c = y.shape
        y = pallas_linear(y.reshape(B * h * w, c), p["fnet.conv3.w"], p["fnet.conv3.b"])
        return y.reshape(B, h, w, -1)

    def _context_encoder(self, x_nhwc):
        p = self.params
        y = conv2d(x_nhwc, p["cnet.conv1.w"], p["cnet.conv1.b"], k=3, stride=2, pad=1, act="relu")
        y = conv2d(y, p["cnet.conv2.w"], p["cnet.conv2.b"], k=3, stride=2, pad=1, act="relu")
        B, h, w, c = y.shape
        # both heads in one fused matmul: tanh on first HIDDEN cols, relu on last CONTEXT cols
        ctx = pallas_linear(y.reshape(B * h * w, c), p["cnet.ctx.w"], p["cnet.ctx.b"],
                            act="tanh_relu_split", split=self.HIDDEN)
        return ctx, (B, h, w)

    # ---- forward ------------------------------------------------------------
    def forward(self, img1_batch, img2_batch):
        p = self.params
        self.selected_out = OrderedDict()

        # TODO(synk): torchvision Raft_Large_Weights transforms (resize / normalize
        # to [-1, 1]) are assumed to be applied by the caller.
        x1 = jnp.transpose(jnp.asarray(img1_batch, jnp.float32), (0, 2, 3, 1))
        x2 = jnp.transpose(jnp.asarray(img2_batch, jnp.float32), (0, 2, 3, 1))
        B = x1.shape[0]

        # feature encoder runs once on the stacked image pair (halves kernel launches)
        f12 = self._feature_encoder(jnp.concatenate([x1, x2], axis=0))
        f1, f2 = f12[:B], f12[B:]
        ctx, (_, h, w) = self._context_encoder(x1)

        hw = h * w
        C = f1.shape[-1]
        f1r = f1.reshape(B, hw, C)
        f2r = f2.reshape(B, hw, C)
        ctx3 = ctx.reshape(B, hw, -1)

        # TODO(synk): full RAFT does a multi-scale local correlation lookup around the
        # current flow; here every pixel attends to its full (tiny) corr row, so the
        # correlation + motion encoder + ConvGRU + flow head loop for all ITERS steps
        # runs as one VMEM-resident Pallas kernel (corr tiles recomputed on the fly,
        # no corr-volume HBM traffic).
        row_tile = _pick_row_tile(hw, C, self.HIDDEN, self.CONTEXT)
        flow, hidden = pallas_fused_update(
            f1r, f2r, ctx3, p, self.ITERS, self.HIDDEN, row_tile)

        # colorize at low resolution; upsample (nearest xDOWN) + xDOWN flow scaling +
        # clip + uint8 cast are folded into pallas_flow_to_image.
        flow_lr = flow.reshape(B, h, w, 2)
        flow_img = pallas_flow_to_image(flow_lr, self.DOWN)

        # forward-hook emulation (intermediate outputs in NCHW, like torch hooks);
        # only materialize what was actually requested.
        want = {name.split("model.")[-1] for name in self.output_layers}
        captures = {}
        if "feature_encoder" in want:
            captures["feature_encoder"] = jnp.transpose(f12, (0, 3, 1, 2))
        if "context_encoder" in want:
            captures["context_encoder"] = jnp.transpose(ctx.reshape(B, h, w, -1), (0, 3, 1, 2))
        if "corr_block" in want:
            captures["corr_block"] = pallas_correlation(f1r, f2r)
        if "update_block" in want:
            captures["update_block"] = jnp.transpose(hidden.reshape(B, h, w, -1), (0, 3, 1, 2))
        for name in self.output_layers:
            short = name.split("model.")[-1]
            if short in captures:
                self.selected_out[name] = captures[short]

        return flow_img, self.selected_out

    __call__ = forward

    def extract(self):
        pass


# ----------------------------------------------------------------------------
if __name__ == "__main__":
    key = jax.random.PRNGKey(0)
    k1, k2 = jax.random.split(key)
    img1 = jax.random.uniform(k1, (2, 3, 16, 16), jnp.float32, -1.0, 1.0)
    img2 = jax.random.uniform(k2, (2, 3, 16, 16), jnp.float32, -1.0, 1.0)

    model = Raft(output_layers=["model.feature_encoder", "update_block"])
    flow_img, selected = model.forward(img1, img2)

    flow_img = jax.block_until_ready(flow_img)
    for v in selected.values():
        jax.block_until_ready(v)

    assert flow_img.shape == (2, 3, 16, 16) and flow_img.dtype == jnp.uint8
    assert "model.feature_encoder" in selected and "update_block" in selected
    print("KERNEL_OK")
</pallas_src>

<mosaic_0001>
module attributes {stable_mosaic.version = 11 : i64} {
  func.func @_linear_act_kernel(%arg0: i32, %arg1: memref<256x27xf32, #tpu.memory_space<vmem>>, %arg2: memref<27x16xbf16, #tpu.memory_space<vmem>>, %arg3: memref<1x16xf32, #tpu.memory_space<vmem>>, %arg4: memref<256x16xf32, #tpu.memory_space<vmem>>) attributes {dimension_semantics = [#tpu.dimension_semantics<parallel>], iteration_bounds = array<i64: 1>, scalar_prefetch = 0 : i64, scratch_operands = 0 : i64, tpu.core_type = #tpu.core_type<tc>, window_params = [{transform_indices = @transform_0, window_bounds = array<i64: 256, 27>}, {pipeline_mode = #tpu.pipeline_mode<synchronous>, transform_indices = @transform_1, window_bounds = array<i64: 27, 16>}, {pipeline_mode = #tpu.pipeline_mode<synchronous>, transform_indices = @transform_2, window_bounds = array<i64: 1, 16>}, {transform_indices = @transform_3, window_bounds = array<i64: 256, 16>}]} {
    %c0 = arith.constant 0 : index
    %c0_0 = arith.constant 0 : index
    %0 = vector.load %arg1[%c0, %c0_0] : memref<256x27xf32, #tpu.memory_space<vmem>>, vector<256x27xf32>
    %1 = arith.truncf %0 : vector<256x27xf32> to vector<256x27xbf16>
    %c0_1 = arith.constant 0 : index
    %c0_2 = arith.constant 0 : index
    %2 = vector.load %arg2[%c0_1, %c0_2] : memref<27x16xbf16, #tpu.memory_space<vmem>>, vector<27x16xbf16>
    %cst = arith.constant dense<0.000000e+00> : vector<256x16xf32>
    %3 = tpu.matmul %1, %2, %cst {dimension_numbers = #tpu.dot_dimension_numbers<[1], [0], [0], [1], [0, 0, 1, 1], [], []>} : vector<256x27xbf16>, vector<27x16xbf16>, vector<256x16xf32> -> vector<256x16xf32>
    %c0_3 = arith.constant 0 : index
    %c0_4 = arith.constant 0 : index
    %4 = vector.load %arg3[%c0_3, %c0_4] : memref<1x16xf32, #tpu.memory_space<vmem>>, vector<1x16xf32>
    %5 = vector.broadcast %4 : vector<1x16xf32> to vector<256x16xf32>
    %6 = arith.addf %3, %5 : vector<256x16xf32>
    %cst_5 = arith.constant 0.000000e+00 : f32
    %7 = vector.broadcast %cst_5 : f32 to vector<256x16xf32>
    %8 = arith.maximumf %6, %7 : vector<256x16xf32>
    %c0_6 = arith.constant 0 : index
    %c0_7 = arith.constant 0 : index
    %9 = vector.load %arg4[%c0_6, %c0_7] : memref<256x16xf32, #tpu.memory_space<vmem>>, vector<256x16xf32>
    tpu.vector_store %arg4[%c0_6, %c0_7], %8 {strides = array<i32>} : memref<256x16xf32, #tpu.memory_space<vmem>>, vector<256x16xf32>,
    return
  }
  func.func @transform_0(%arg0: i32) -> (i32, i32) {
    %c0_i32 = arith.constant 0 : i32
    %c0_i32_0 = arith.constant 0 : i32
    return %arg0, %c0_i32 : i32, i32
  }
  func.func @transform_1(%arg0: i32) -> (i32, i32) {
    %c0_i32 = arith.constant 0 : i32
    %c0_i32_0 = arith.constant 0 : i32
    %c0_i32_1 = arith.constant 0 : i32
    return %c0_i32, %c0_i32_0 : i32, i32
  }
  func.func @transform_2(%arg0: i32) -> (i32, i32) {
    %c0_i32 = arith.constant 0 : i32
    %c0_i32_0 = arith.constant 0 : i32
    %c0_i32_1 = arith.constant 0 : i32
    return %c0_i32, %c0_i32_0 : i32, i32
  }
  func.func @transform_3(%arg0: i32) -> (i32, i32) {
    %c0_i32 = arith.constant 0 : i32
    %c0_i32_0 = arith.constant 0 : i32
    return %arg0, %c0_i32 : i32, i32
  }
}

</mosaic_0001>

<llo_original>
// kernel: tpu_custom_call.1
$region0: #{tpu_custom_call.1}
  #allocation0 [shape = 'u32[]', space=smem, size = 0x4, offset = 0x4, fixed_abs, tag = 'smem constant byte address 0x4 - core index']
  #allocation1 [shape = 'u32[72,128]{1,0:T(1,128)}', space=vmem, size = 0x9000, scoped, tag = 'internal scratch']
  %s0 = inlined_call_operand.vmem [shape: f32[256,27], index: 0, kind: input, shape index: {}]
  %s1 = inlined_call_operand.vmem [shape: bf16[27,16], index: 1, kind: input, shape index: {}]
  %s2 = inlined_call_operand.vmem [shape: f32[1,16], index: 2, kind: input, shape index: {}]
  %s3 = inlined_call_operand.vmem [shape: f32[256,16], index: 3, kind: output, shape index: {}]
  %s4 = sld [smem:[#allocation0]]
  $region22: #{tpu_custom_call.1} parent=0
    _
  %s6 = ssub.s32 1, %s4
  %s7 = scalar_select 0, %s6, %s4
  // Predicated region
  $region2: #{tpu_custom_call.1} parent=0 // pred_check
    _
  $region3: #{tpu_custom_call.1} parent=0 // pred_check_branch
    %9 = sbr.rel (0) target = $region5
  $region4: #{tpu_custom_call.1} parent=0 // pred_region
    _
  $region5: #{tpu_custom_call.1} parent=0 // pred_fallthru
    _
  // Predicated region
  $region6: #{tpu_custom_call.1} parent=0 // pred_check
    _
  $region7: #{tpu_custom_call.1} parent=0 // pred_check_branch
    %11 = sbr.rel (0) target = $region9
  $region8: #{tpu_custom_call.1} parent=0 // pred_region
    _
  $region9: #{tpu_custom_call.1} parent=0 // pred_fallthru
    _
  // Predicated region
  $region10: #{tpu_custom_call.1} parent=0 // pred_check
    _
  $region11: #{tpu_custom_call.1} parent=0 // pred_check_branch
    %13 = sbr.rel (0) target = $region13
  $region12: #{tpu_custom_call.1} parent=0 // pred_region
    _
  $region13: #{tpu_custom_call.1} parent=0 // pred_fallthru
    _
  %v15 = vld [vmem:[%s0] sm:$0xff]
  %v16 = vld [vmem:[%s0 + $0x8] sm:$0xff]
  %v17 = vld [vmem:[%s0 + $0x10] sm:$0xff]
  %v18 = vld [vmem:[%s0 + $0x18] sm:$0xff]
  %v19 = vld [vmem:[%s0 + $0x20] sm:$0xff]
  %v20 = vld [vmem:[%s0 + $0x28] sm:$0xff]
  %v21 = vld [vmem:[%s0 + $0x30] sm:$0xff]
  %v22 = vld [vmem:[%s0 + $0x38] sm:$0xff]
  %v23 = vld [vmem:[%s0 + $0x40] sm:$0xff]
  %v24 = vld [vmem:[%s0 + $0x48] sm:$0xff]
  %v25 = vld [vmem:[%s0 + $0x50] sm:$0xff]
  %v26 = vld [vmem:[%s0 + $0x58] sm:$0xff]
  %v27 = vld [vmem:[%s0 + $0x60] sm:$0xff]
  %v28 = vld [vmem:[%s0 + $0x68] sm:$0xff]
  %v29 = vld [vmem:[%s0 + $0x70] sm:$0xff]
  %v30 = vld [vmem:[%s0 + $0x78] sm:$0xff]
  %v31 = vld [vmem:[%s0 + $0x80] sm:$0xff]
  %v32 = vld [vmem:[%s0 + $0x88] sm:$0xff]
  %v33 = vld [vmem:[%s0 + $0x90] sm:$0xff]
  %v34 = vld [vmem:[%s0 + $0x98] sm:$0xff]
  %v35 = vld [vmem:[%s0 + $0xa0] sm:$0xff]
  %v36 = vld [vmem:[%s0 + $0xa8] sm:$0xff]
  %v37 = vld [vmem:[%s0 + $0xb0] sm:$0xff]
  %v38 = vld [vmem:[%s0 + $0xb8] sm:$0xff]
  %v39 = vld [vmem:[%s0 + $0xc0] sm:$0xff]
  %v40 = vld [vmem:[%s0 + $0xc8] sm:$0xff]
  %v41 = vld [vmem:[%s0 + $0xd0] sm:$0xff]
  %v42 = vld [vmem:[%s0 + $0xd8] sm:$0xff]
  %v43 = vld [vmem:[%s0 + $0xe0] sm:$0xff]
  %v44 = vld [vmem:[%s0 + $0xe8] sm:$0xff]
  %v45 = vld [vmem:[%s0 + $0xf0] sm:$0xff]
  %v46 = vld [vmem:[%s0 + $0xf8] sm:$0xff]
  %v47 = vpack.c.bf16 %v16, %v15
  %v48 = vpack.c.bf16 %v18, %v17
  %v49 = vpack.c.bf16 %v20, %v19
  %v50 = vpack.c.bf16 %v22, %v21
  %v51 = vpack.c.bf16 %v24, %v23
  %v52 = vpack.c.bf16 %v26, %v25
  %v53 = vpack.c.bf16 %v28, %v27
  %v54 = vpack.c.bf16 %v30, %v29
  %v55 = vpack.c.bf16 %v32, %v31
  %v56 = vpack.c.bf16 %v34, %v33
  %v57 = vpack.c.bf16 %v36, %v35
  %v58 = vpack.c.bf16 %v38, %v37
  %v59 = vpack.c.bf16 %v40, %v39
  %v60 = vpack.c.bf16 %v42, %v41
  %v61 = vpack.c.bf16 %v44, %v43
  %v62 = vpack.c.bf16 %v46, %v45
  %v63 = vld [vmem:[%s1] sm:$0xf]
  %v64 = vld [vmem:[%s1 + $0x4] sm:$0xf]
  %v65 = vld [vmem:[%s1 + $0x8] sm:$0xf]
  %v66 = vld [vmem:[%s1 + $0xc] sm:$0x3]
  %v67 = vld [vmem:[%s2] sm:$0x1]
  %v69 = vperm.slane %v67, 0
  %v75 = vunpack.c.l.b16 %v63
  %v76 = vunpack.c.l.b16 %v64
  %v77 = vunpack.c.l.b16 %v65
  %v78 = vunpack.c.l.b16 %v66
  %v79 = vpack.c.b16 %v76, %v75
  %v80 = vpack.c.b16 %v78, %v77
  %vm82 = vcmask 220160
  %v84 = vsel %vm82, %v47, 0
  %v87 = vsel %vm82, %v48, 0
  %v90 = vsel %vm82, %v49, 0
  %v93 = vsel %vm82, %v50, 0
  %v96 = vsel %vm82, %v51, 0
  %v99 = vsel %vm82, %v52, 0
  %v102 = vsel %vm82, %v53, 0
  %v105 = vsel %vm82, %v54, 0
  %v108 = vsel %vm82, %v55, 0
  %v111 = vsel %vm82, %v56, 0
  %v114 = vsel %vm82, %v57, 0
  %v117 = vsel %vm82, %v58, 0
  %v120 = vsel %vm82, %v59, 0
  %v123 = vsel %vm82, %v60, 0
  %v126 = vsel %vm82, %v61, 0
  %v129 = vsel %vm82, %v62, 0
  %vm131 = vcmask 1044480
  %vm132 = vcmask 1045504
  %v133 = vsel %vm131, 4294967295, 65535
  %v134 = vsel %vm132, %v133, 0
  %v136 = vand.u32 %v80, %v134
  %138 = vmatpush.bf16.msra.mxu0 0
  %139 = vmatpush.bf16.msra.mxu0 0
  %140 = vmatpush.bf16.msra.mxu0 0
  %141 = vmatpush.bf16.msra.mxu0 0
  %142 = vmatpush.bf16.msra.mxu0 0
  %143 = vmatpush.bf16.msra.mxu0 0
  %144 = vmatpush.bf16.msra.mxu0 %v136
  %145 = vmatpush.bf16.msra.mxu0 %v79
  %146 = vmatmul.bf16.gmra.mxu0 %v84
  %v147 = vpop.f32.mrf.mxu0
  %v148 = vadd.f32 %v69, %v147
  %v149 = vpop.f32.mrf.mxu0
  %v150 = vadd.f32 %v69, %v149
  %151 = vmatmul.bf16.gmra.mxu0 %v87
  %v152 = vpop.f32.mrf.mxu0
  %v153 = vadd.f32 %v69, %v152
  %v154 = vpop.f32.mrf.mxu0
  %v155 = vadd.f32 %v69, %v154
  %156 = vmatmul.bf16.gmra.mxu0 %v90
  %v157 = vpop.f32.mrf.mxu0
  %v158 = vadd.f32 %v69, %v157
  %v159 = vpop.f32.mrf.mxu0
  %v160 = vadd.f32 %v69, %v159
  %161 = vmatmul.bf16.gmra.mxu0 %v93
  %v162 = vpop.f32.mrf.mxu0
  %v163 = vadd.f32 %v69, %v162
  %v164 = vpop.f32.mrf.mxu0
  %v165 = vadd.f32 %v69, %v164
  %166 = vmatmul.bf16.gmra.mxu0 %v96
  %v167 = vpop.f32.mrf.mxu0
  %v168 = vadd.f32 %v69, %v167
  %v169 = vpop.f32.mrf.mxu0
  %v170 = vadd.f32 %v69, %v169
  %171 = vmatmul.bf16.gmra.mxu0 %v99
  %v172 = vpop.f32.mrf.mxu0
  %v173 = vadd.f32 %v69, %v172
  %v174 = vpop.f32.mrf.mxu0
  %v175 = vadd.f32 %v69, %v174
  %176 = vmatmul.bf16.gmra.mxu0 %v102
  %v177 = vpop.f32.mrf.mxu0
  %v178 = vadd.f32 %v69, %v177
  %v179 = vpop.f32.mrf.mxu0
  %v180 = vadd.f32 %v69, %v179
  %181 = vmatmul.bf16.gmra.mxu0 %v105
  %v182 = vpop.f32.mrf.mxu0
  %v183 = vadd.f32 %v69, %v182
  %v184 = vpop.f32.mrf.mxu0
  %v185 = vadd.f32 %v69, %v184
  %186 = vmatmul.bf16.gmra.mxu0 %v108
  %v187 = vpop.f32.mrf.mxu0
  %v188 = vadd.f32 %v69, %v187
  %v189 = vpop.f32.mrf.mxu0
  %v190 = vadd.f32 %v69, %v189
  %191 = vmatmul.bf16.gmra.mxu0 %v111
  %v192 = vpop.f32.mrf.mxu0
  %v193 = vadd.f32 %v69, %v192
  %v194 = vpop.f32.mrf.mxu0
  %v195 = vadd.f32 %v69, %v194
  %196 = vmatmul.bf16.gmra.mxu0 %v114
  %v197 = vpop.f32.mrf.mxu0
  %v198 = vadd.f32 %v69, %v197
  %v199 = vpop.f32.mrf.mxu0
  %v200 = vadd.f32 %v69, %v199
  %201 = vmatmul.bf16.gmra.mxu0 %v117
  %v202 = vpop.f32.mrf.mxu0
  %v203 = vadd.f32 %v69, %v202
  %v204 = vpop.f32.mrf.mxu0
  %v205 = vadd.f32 %v69, %v204
  %206 = vmatmul.bf16.gmra.mxu0 %v120
  %v207 = vpop.f32.mrf.mxu0
  %v208 = vadd.f32 %v69, %v207
  %v209 = vpop.f32.mrf.mxu0
  %v210 = vadd.f32 %v69, %v209
  %211 = vmatmul.bf16.gmra.mxu0 %v123
  %v212 = vpop.f32.mrf.mxu0
  %v213 = vadd.f32 %v69, %v212
  %v214 = vpop.f32.mrf.mxu0
  %v215 = vadd.f32 %v69, %v214
  %216 = vmatmul.bf16.gmra.mxu0 %v126
  %v217 = vpop.f32.mrf.mxu0
  %v218 = vadd.f32 %v69, %v217
  %v219 = vpop.f32.mrf.mxu0
  %v220 = vadd.f32 %v69, %v219
  %221 = vmatmul.bf16.gmra.mxu0 %v129
  %v222 = vpop.f32.mrf.mxu0
  %v223 = vadd.f32 %v69, %v222
  %v224 = vpop.f32.mrf.mxu0
  %v225 = vadd.f32 %v69, %v224
  %226 = vdwg.mxu0
  %v227 = vmax.f32 %v148, 0.0
  %v228 = vmax.f32 %v150, 0.0
  %v229 = vmax.f32 %v153, 0.0
  %v230 = vmax.f32 %v155, 0.0
  %v231 = vmax.f32 %v158, 0.0
  %v232 = vmax.f32 %v160, 0.0
  %v233 = vmax.f32 %v163, 0.0
  %v234 = vmax.f32 %v165, 0.0
  %v235 = vmax.f32 %v168, 0.0
  %v236 = vmax.f32 %v170, 0.0
  %v237 = vmax.f32 %v173, 0.0
  %v238 = vmax.f32 %v175, 0.0
  %v239 = vmax.f32 %v178, 0.0
  %v240 = vmax.f32 %v180, 0.0
  %v241 = vmax.f32 %v183, 0.0
  %v242 = vmax.f32 %v185, 0.0
  %v243 = vmax.f32 %v188, 0.0
  %v244 = vmax.f32 %v190, 0.0
  %v245 = vmax.f32 %v193, 0.0
  %v246 = vmax.f32 %v195, 0.0
  %v247 = vmax.f32 %v198, 0.0
  %v248 = vmax.f32 %v200, 0.0
  %v249 = vmax.f32 %v203, 0.0
  %v250 = vmax.f32 %v205, 0.0
  %v251 = vmax.f32 %v208, 0.0
  %v252 = vmax.f32 %v210, 0.0
  %v253 = vmax.f32 %v213, 0.0
  %v254 = vmax.f32 %v215, 0.0
  %v255 = vmax.f32 %v218, 0.0
  %v256 = vmax.f32 %v220, 0.0
  %v257 = vmax.f32 %v223, 0.0
  %v258 = vmax.f32 %v225, 0.0
  %vm259 = vcmask 130048
  %260 = vst.msk [vmem:[%s3] sm:$0xff] %vm259, %v227
  %261 = vst.msk [vmem:[%s3 + $0x8] sm:$0xff] %vm259, %v228
  %262 = vst.msk [vmem:[%s3 + $0x10] sm:$0xff] %vm259, %v229
  %263 = vst.msk [vmem:[%s3 + $0x18] sm:$0xff] %vm259, %v230
  %264 = vst.msk [vmem:[%s3 + $0x20] sm:$0xff] %vm259, %v231
  %265 = vst.msk [vmem:[%s3 + $0x28] sm:$0xff] %vm259, %v232
  %266 = vst.msk [vmem:[%s3 + $0x30] sm:$0xff] %vm259, %v233
  %267 = vst.msk [vmem:[%s3 + $0x38] sm:$0xff] %vm259, %v234
  %268 = vst.msk [vmem:[%s3 + $0x40] sm:$0xff] %vm259, %v235
  %269 = vst.msk [vmem:[%s3 + $0x48] sm:$0xff] %vm259, %v236
  %270 = vst.msk [vmem:[%s3 + $0x50] sm:$0xff] %vm259, %v237
  %271 = vst.msk [vmem:[%s3 + $0x58] sm:$0xff] %vm259, %v238
  %272 = vst.msk [vmem:[%s3 + $0x60] sm:$0xff] %vm259, %v239
  %273 = vst.msk [vmem:[%s3 + $0x68] sm:$0xff] %vm259, %v240
  %274 = vst.msk [vmem:[%s3 + $0x70] sm:$0xff] %vm259, %v241
  %275 = vst.msk [vmem:[%s3 + $0x78] sm:$0xff] %vm259, %v242
  %276 = vst.msk [vmem:[%s3 + $0x80] sm:$0xff] %vm259, %v243
  %277 = vst.msk [vmem:[%s3 + $0x88] sm:$0xff] %vm259, %v244
  %278 = vst.msk [vmem:[%s3 + $0x90] sm:$0xff] %vm259, %v245
  %279 = vst.msk [vmem:[%s3 + $0x98] sm:$0xff] %vm259, %v246
  %280 = vst.msk [vmem:[%s3 + $0xa0] sm:$0xff] %vm259, %v247
  %281 = vst.msk [vmem:[%s3 + $0xa8] sm:$0xff] %vm259, %v248
  %282 = vst.msk [vmem:[%s3 + $0xb0] sm:$0xff] %vm259, %v249
  %283 = vst.msk [vmem:[%s3 + $0xb8] sm:$0xff] %vm259, %v250
  %284 = vst.msk [vmem:[%s3 + $0xc0] sm:$0xff] %vm259, %v251
  %285 = vst.msk [vmem:[%s3 + $0xc8] sm:$0xff] %vm259, %v252
  %286 = vst.msk [vmem:[%s3 + $0xd0] sm:$0xff] %vm259, %v253
  %287 = vst.msk [vmem:[%s3 + $0xd8] sm:$0xff] %vm259, %v254
  %288 = vst.msk [vmem:[%s3 + $0xe0] sm:$0xff] %vm259, %v255
  %289 = vst.msk [vmem:[%s3 + $0xe8] sm:$0xff] %vm259, %v256
  %290 = vst.msk [vmem:[%s3 + $0xf0] sm:$0xff] %vm259, %v257
  %291 = vst.msk [vmem:[%s3 + $0xf8] sm:$0xff] %vm259, %v258
  // Predicated region
  $region14: #{tpu_custom_call.1} parent=0 // pred_check
    _
  $region15: #{tpu_custom_call.1} parent=0 // pred_check_branch
    %293 = sbr.rel (0) target = $region17
  $region16: #{tpu_custom_call.1} parent=0 // pred_region
    _
  $region17: #{tpu_custom_call.1} parent=0 // pred_fallthru
    _
  // Predicated region
  $region18: #{tpu_custom_call.1} parent=0 // pred_check
    _
  $region19: #{tpu_custom_call.1} parent=0 // pred_check_branch
    %295 = sbr.rel (0) target = $region21
  $region20: #{tpu_custom_call.1} parent=0 // pred_region
    _
  $region21: #{tpu_custom_call.1} parent=0 // pred_fallthru
    _

</llo_original>
